<compile_context>
chip_gen: v7x
topology: tpu7x:2x2x1
jax: 0.10.0
libtpu: 0.0.40
codegen_flags: <defaults>
</compile_context>

<pallas_src>
import functools

import jax
import jax.numpy as jnp
from jax.experimental import pallas as pl
from jax.experimental.pallas import tpu as pltpu


# --------------------------------------------------------------------------- #
# Kernels
# --------------------------------------------------------------------------- #
def _kernel_static_eps(x_ref, w_ref, rc_ref, tb_ref, *, inv_eps, bias):
    """Per-batch-tile body with compile-time 1/epsilon.

    x_ref : VMEM (TB, R)   input dtype
    w_ref : VMEM (1, R)    |weight| (grid-invariant block)
    rc_ref: VMEM (TB, R)   rule_contrib, input dtype
    tb_ref: VMEM (TB, 1)   temp + bias, f32
    """
    rc = x_ref[...] * w_ref[...]                       # broadcast over batch rows
    rc_ref[...] = rc.astype(rc_ref.dtype)

    rc32 = rc.astype(jnp.float32)
    if abs(inv_eps - round(inv_eps)) < 1e-12:
        powed = rc32 ** int(round(inv_eps))            # integer_pow -> VPU mul chain
    else:
        powed = rc32 ** jnp.float32(inv_eps)
    temp = jnp.sum(powed, axis=-1, keepdims=True)      # (TB, 1) row reduce
    tb_ref[...] = (temp + jnp.float32(bias)).astype(tb_ref.dtype)


def _kernel_dynamic_eps(eps_ref, x_ref, w_ref, rc_ref, tb_ref, *, bias):
    """Per-batch-tile body with runtime epsilon scalar (SMEM)."""
    inv_eps = 1.0 / eps_ref[0]
    rc = x_ref[...] * w_ref[...]
    rc_ref[...] = rc.astype(rc_ref.dtype)

    powed = jnp.power(rc.astype(jnp.float32), inv_eps)  # exp/log path on EUP
    temp = jnp.sum(powed, axis=-1, keepdims=True)
    tb_ref[...] = (temp + jnp.float32(bias)).astype(tb_ref.dtype)


# --------------------------------------------------------------------------- #
# Wrapper
# --------------------------------------------------------------------------- #
def _choose_batch_tile(B, R, itemsize):
    """Pick a batch tile so double-buffered x + rc tiles stay ~<= 8 MiB.

    8 MiB keeps us safely under v5e's 16 MiB default scoped VMEM and far under
    v6e/v7x limits, while still being large enough (>=512 rows for modest R)
    to hit ~85% of HBM roofline on the pipelined path.
    """
    budget = 8 * 1024 * 1024
    per_row = 2 * 2 * R * max(int(itemsize), 1)        # (x + rc) * 2 buffers
    tb = budget // max(per_row, 1)
    tb = max(8, min(int(tb), 1024))
    if tb >= B:
        return B                                       # full-extent block (always legal)
    return (tb // 8) * 8                               # multiple of 8 sublanes


def inference_layer_pos(x, weight, epsilon, bias=-2.0):
    """Pallas implementation of InferenceLayerPos.forward (epsilon_training=False)."""
    B, R = x.shape
    dtype = x.dtype
    itemsize = jnp.dtype(dtype).itemsize

    # sqrt(weight^2) == |weight|, computed once, kept grid-invariant in VMEM.
    w_abs = jnp.abs(weight).astype(dtype).reshape(1, R)

    tb = _choose_batch_tile(B, R, itemsize)
    grid = (pl.cdiv(B, tb),)

    x_spec = pl.BlockSpec((tb, R), lambda i: (i, 0))
    w_spec = pl.BlockSpec((1, R), lambda i: (0, 0))    # DMA'd once, stays resident
    rc_spec = pl.BlockSpec((tb, R), lambda i: (i, 0))
    tb_spec = pl.BlockSpec((tb, 1), lambda i: (i, 0))

    static_eps = isinstance(epsilon, (int, float))

    bytes_accessed = int(
        B * R * itemsize            # read x
        + R * itemsize              # read |weight|
        + B * R * itemsize          # write rule_contrib
        + B * 4                     # write temp + bias (f32)
    )
    if static_eps and abs(1.0 / float(epsilon) - round(1.0 / float(epsilon))) < 1e-12:
        transcendentals = 0
    else:
        transcendentals = 2 * B * R                    # exp + log per element
    cost = pl.CostEstimate(
        flops=3 * B * R, transcendentals=transcendentals, bytes_accessed=bytes_accessed
    )

    out_shapes = (
        jax.ShapeDtypeStruct((B, R), dtype),           # rule_contrib (native dtype)
        jax.ShapeDtypeStruct((B, 1), jnp.float32),     # temp + bias
    )

    if static_eps:
        kernel = functools.partial(
            _kernel_static_eps, inv_eps=1.0 / float(epsilon), bias=float(bias)
        )
        in_specs = [x_spec, w_spec]
        args = (x, w_abs)
    else:
        kernel = functools.partial(_kernel_dynamic_eps, bias=float(bias))
        in_specs = [
            pl.BlockSpec(memory_space=pltpu.MemorySpace.SMEM),   # epsilon scalar
            x_spec,
            w_spec,
        ]
        args = (jnp.asarray(epsilon, dtype=jnp.float32).reshape(1), x, w_abs)

    rule_contrib, temp_bias = pl.pallas_call(
        kernel,
        grid=grid,
        out_shape=out_shapes,
        in_specs=in_specs,
        out_specs=(rc_spec, tb_spec),
        compiler_params=pltpu.CompilerParams(
            dimension_semantics=("parallel",),
        ),
        cost_estimate=cost,
    )(*args)

    # Tiny (B, 2) stack built in the wrapper -> no masked 2-wide stores in-kernel.
    out = jnp.concatenate([jnp.zeros_like(temp_bias), temp_bias], axis=-1)
    return out, rule_contrib


# --------------------------------------------------------------------------- #
# Pure-JAX reference mirroring the PyTorch forward
# --------------------------------------------------------------------------- #
def _reference(x, weight, epsilon, bias=-2.0):
    rc = x * jnp.sqrt(weight**2)[None, :]
    temp = jnp.sum(rc ** (1.0 / epsilon), axis=-1)
    out = jnp.stack([jnp.zeros_like(temp), temp + bias], axis=-1)
    return out, rc


if __name__ == "__main__":
    key = jax.random.PRNGKey(0)
    kx, kw = jax.random.split(key)

    batch = 8
    n_rules = 32
    epsilon = 0.5

    # Firing strengths are nonnegative (outputs of a rule layer), so use U[0,1).
    x = jax.random.uniform(kx, (batch, n_rules), dtype=jnp.float32)
    # Module's reset_parameters gives constant 0.1; perturb for a non-trivial test.
    weight = 0.1 + 0.05 * jax.random.normal(kw, (n_rules,), dtype=jnp.float32)

    out_ref, rc_ref = _reference(x, weight, epsilon)

    # Static-epsilon path (integer-power multiply chain).
    out_s, rc_s = inference_layer_pos(x, weight, epsilon)
    out_s = jax.block_until_ready(out_s)
    rc_s = jax.block_until_ready(rc_s)
    assert out_s.shape == (batch, 2)
    assert rc_s.shape == (batch, n_rules)
    assert jnp.allclose(out_s, out_ref, atol=1e-5, rtol=1e-5)
    assert jnp.allclose(rc_s, rc_ref, atol=1e-6, rtol=1e-6)

    # Runtime-epsilon path (SMEM scalar, pow via exp/log).
    out_d, rc_d = inference_layer_pos(x, weight, jnp.float32(epsilon))
    out_d = jax.block_until_ready(out_d)
    rc_d = jax.block_until_ready(rc_d)
    assert jnp.allclose(out_d, out_ref, atol=1e-4, rtol=1e-4)
    assert jnp.allclose(rc_d, rc_ref, atol=1e-6, rtol=1e-6)

    print("KERNEL_OK")
</pallas_src>

<mosaic_0001>
module attributes {stable_mosaic.version = 11 : i64} {
  func.func @_kernel_static_eps(%arg0: i32, %arg1: memref<8x32xf32, #tpu.memory_space<vmem>>, %arg2: memref<1x32xf32, #tpu.memory_space<vmem>>, %arg3: memref<8x32xf32, #tpu.memory_space<vmem>>, %arg4: memref<8x1xf32, #tpu.memory_space<vmem>>) attributes {dimension_semantics = [#tpu.dimension_semantics<parallel>], iteration_bounds = array<i64: 1>, scalar_prefetch = 0 : i64, scratch_operands = 0 : i64, tpu.core_type = #tpu.core_type<tc>, window_params = [{transform_indices = @transform_0, window_bounds = array<i64: 8, 32>}, {pipeline_mode = #tpu.pipeline_mode<synchronous>, transform_indices = @transform_1, window_bounds = array<i64: 1, 32>}, {transform_indices = @transform_2, window_bounds = array<i64: 8, 32>}, {transform_indices = @transform_3, window_bounds = array<i64: 8, 1>}]} {
    %c0 = arith.constant 0 : index
    %c0_0 = arith.constant 0 : index
    %0 = vector.load %arg1[%c0, %c0_0] : memref<8x32xf32, #tpu.memory_space<vmem>>, vector<8x32xf32>
    %c0_1 = arith.constant 0 : index
    %c0_2 = arith.constant 0 : index
    %1 = vector.load %arg2[%c0_1, %c0_2] : memref<1x32xf32, #tpu.memory_space<vmem>>, vector<1x32xf32>
    %2 = vector.broadcast %1 : vector<1x32xf32> to vector<8x32xf32>
    %3 = arith.mulf %0, %2 : vector<8x32xf32>
    %c0_3 = arith.constant 0 : index
    %c0_4 = arith.constant 0 : index
    %4 = vector.load %arg3[%c0_3, %c0_4] : memref<8x32xf32, #tpu.memory_space<vmem>>, vector<8x32xf32>
    tpu.vector_store %arg3[%c0_3, %c0_4], %3 {strides = array<i32>} : memref<8x32xf32, #tpu.memory_space<vmem>>, vector<8x32xf32>,
    %5 = arith.mulf %3, %3 : vector<8x32xf32>
    %cst = arith.constant dense<0.000000e+00> : vector<8xf32>
    %6 = vector.multi_reduction <add>, %5, %cst [1] : vector<8x32xf32> to vector<8xf32>
    %7 = vector.shape_cast %6 : vector<8xf32> to vector<8x1xf32>
    %cst_5 = arith.constant -2.000000e+00 : f32
    %8 = vector.broadcast %cst_5 : f32 to vector<8x1xf32>
    %9 = arith.addf %7, %8 : vector<8x1xf32>
    %c0_6 = arith.constant 0 : index
    %c0_7 = arith.constant 0 : index
    %10 = vector.load %arg4[%c0_6, %c0_7] : memref<8x1xf32, #tpu.memory_space<vmem>>, vector<8x1xf32>
    tpu.vector_store %arg4[%c0_6, %c0_7], %9 {strides = array<i32>} : memref<8x1xf32, #tpu.memory_space<vmem>>, vector<8x1xf32>,
    return
  }
  func.func @transform_0(%arg0: i32) -> (i32, i32) {
    %c0_i32 = arith.constant 0 : i32
    %c0_i32_0 = arith.constant 0 : i32
    return %arg0, %c0_i32 : i32, i32
  }
  func.func @transform_1(%arg0: i32) -> (i32, i32) {
    %c0_i32 = arith.constant 0 : i32
    %c0_i32_0 = arith.constant 0 : i32
    %c0_i32_1 = arith.constant 0 : i32
    return %c0_i32, %c0_i32_0 : i32, i32
  }
  func.func @transform_2(%arg0: i32) -> (i32, i32) {
    %c0_i32 = arith.constant 0 : i32
    %c0_i32_0 = arith.constant 0 : i32
    return %arg0, %c0_i32 : i32, i32
  }
  func.func @transform_3(%arg0: i32) -> (i32, i32) {
    %c0_i32 = arith.constant 0 : i32
    %c0_i32_0 = arith.constant 0 : i32
    return %arg0, %c0_i32 : i32, i32
  }
}

</mosaic_0001>

<llo_original>
// kernel: tpu_custom_call.1
$region0: #{tpu_custom_call.1}
  #allocation0 [shape = 'u32[]', space=smem, size = 0x4, offset = 0x4, fixed_abs, tag = 'smem constant byte address 0x4 - core index']
  #allocation1 [shape = 'u32[144,128]{1,0:T(1,128)}', space=vmem, size = 0x12000, scoped, tag = 'internal scratch']
  %s0 = inlined_call_operand.hbm [shape: f32[8,32], index: 0, kind: input, shape index: {}]
  %s1 = inlined_call_operand.vmem [shape: f32[1,32], index: 1, kind: input, shape index: {}]
  %s2 = inlined_call_operand.hbm [shape: f32[8,32], index: 2, kind: output, shape index: {0}]
  %s3 = inlined_call_operand.vmem [shape: f32[8,1], index: 3, kind: output, shape index: {1}]
  %4 = xla_tuple %s2, %s3
  %s5 = sld [smem:[#allocation0]]
  $region30: #{tpu_custom_call.1} parent=0
    _
  %s7 = ssub.s32 1, %s5
  %s8 = scalar_select 0, %s7, %s5
  $region1: #{tpu_custom_call.1} parent=0
    #allocation2 [shape = 'u8[4096]{0}', space=vmem, size = 0x1000, scoped, tag = 'input window, operand 0, single buffered']
    #allocation3 [shape = 's32[1]{0}', space=sflag, size = 0x4, scoped, tag = 'scoped memory for tpu_custom_call.1']
    #allocation4 [shape = 's32[1]{0}', space=sflag, size = 0x4, scoped, tag = 'scoped memory for tpu_custom_call.1']
    #allocation5 [shape = 'u8[4096]{0}', space=vmem, size = 0x1000, scoped, tag = 'output window, operand 0, single buffered']
    %9 = vsyncpa [#allocation3], 0
    %10 = vsyncpa [#allocation4], 0
    // Predicated region
    $region2: #{tpu_custom_call.1} parent=1 // pred_check
      _
    $region3: #{tpu_custom_call.1} parent=1 // pred_check_branch
      %12 = sbr.rel (0) target = $region5
    $region4: #{tpu_custom_call.1} parent=1 // pred_region
      %s14 = ssub.s32 128, 128
      %15 = vsyncadd [#allocation3], %s14
      %s17 = sshll.u32 [#allocation2], 4
      %s18 = int_to_ptr.vmem [resolvable:$true] %s17
      %20 = dma.hbm_to_vmem [thread:$0]  %s0, 128, %s18, [#allocation3]
    $region5: #{tpu_custom_call.1} parent=1 // pred_fallthru
      _
    // Predicated region
    $region6: #{tpu_custom_call.1} parent=1 // pred_check
      _
    $region7: #{tpu_custom_call.1} parent=1 // pred_check_branch
      %22 = sbr.rel (0) target = $region9
    $region8: #{tpu_custom_call.1} parent=1 // pred_region
      _
    $region9: #{tpu_custom_call.1} parent=1 // pred_fallthru
      _
    // Predicated region
    $region10: #{tpu_custom_call.1} parent=1 // pred_check
      _
    $region11: #{tpu_custom_call.1} parent=1 // pred_check_branch
      %24 = sbr.rel (0) target = $region13
    $region12: #{tpu_custom_call.1} parent=1 // pred_region
      %25 = dma.done [#allocation3], 128
    $region13: #{tpu_custom_call.1} parent=1 // pred_fallthru
      _
    %v26 = vld [vmem:[#allocation2] sm:$0xff]
    %v27 = vld [vmem:[%s1] sm:$0x1]
    %v29 = vlaneseq
    %v30 = vshrl.u32 %v29, 7
    %v31 = vsub.s32 0, %v30
    %v32 = vrot.slane %v27, %v31
    %v34 = vmul.f32 %v26, %v32
    %vm35 = vcmask 261120
    %36 = vst.msk [vmem:[#allocation5] sm:$0xff] %vm35, %v34
    %v37 = vmul.f32 %v34, %v34
    %v38 = vsel %vm35, %v37, 0.0
    %39 = vadd.xlane.f32.xlu0 %v38
    %v40 = vpop.xlane.xlu0 %39
    %v41 = vadd.f32 %v40, -2.0
    %vm42 = vcmask 7168
    %43 = vst.msk [vmem:[%s3] sm:$0xff] %vm42, %v41
    // Predicated region
    $region14: #{tpu_custom_call.1} parent=1 // pred_check
      _
    $region15: #{tpu_custom_call.1} parent=1 // pred_check_branch
      %45 = sbr.rel (0) target = $region17
    $region16: #{tpu_custom_call.1} parent=1 // pred_region
      %s47 = ssub.s32 128, 128
      %48 = vsyncadd [#allocation4], %s47
      %s50 = sshll.u32 [#allocation5], 4
      %s51 = int_to_ptr.vmem [resolvable:$true] %s50
      %53 = dma.vmem_to_hbm [thread:$0]  %s51, 128, %s2, [#allocation4]
    $region17: #{tpu_custom_call.1} parent=1 // pred_fallthru
      _
    // Predicated region
    $region18: #{tpu_custom_call.1} parent=1 // pred_check
      _
    $region19: #{tpu_custom_call.1} parent=1 // pred_check_branch
      %55 = sbr.rel (0) target = $region21
    $region20: #{tpu_custom_call.1} parent=1 // pred_region
      _
    $region21: #{tpu_custom_call.1} parent=1 // pred_fallthru
      _
    // Predicated region
    $region22: #{tpu_custom_call.1} parent=1 // pred_check
      _
    $region23: #{tpu_custom_call.1} parent=1 // pred_check_branch
      %57 = sbr.rel (0) target = $region25
    $region24: #{tpu_custom_call.1} parent=1 // pred_region
      %58 = dma.done [#allocation4], 128
    $region25: #{tpu_custom_call.1} parent=1 // pred_fallthru
      _
    // Predicated region
    $region26: #{tpu_custom_call.1} parent=1 // pred_check
      _
    $region27: #{tpu_custom_call.1} parent=1 // pred_check_branch
      %60 = sbr.rel (0) target = $region29
    $region28: #{tpu_custom_call.1} parent=1 // pred_region
      _
    $region29: #{tpu_custom_call.1} parent=1 // pred_fallthru
      _
    %61 = vsyncpa [#allocation3], 1
    %62 = vsyncpa [#allocation4], 1

</llo_original>
